<compile_context>
chip_gen: v7x
topology: tpu7x:2x2x1
jax: 0.10.0
libtpu: 0.0.40
codegen_flags: <defaults>
</compile_context>

<pallas_src>
import jax
import jax.numpy as jnp
from jax.experimental import pallas as pl
from jax.experimental.pallas import tpu as pltpu

LANES = 512  # lane-dense last dim (multiple of 128)


def _log1p_scale_kernel(inv_margin_ref, x_ref, o_ref):
    # log(1 + x * (1/margin)).  The multiply is one VALU op and the log sits in
    # the EUP slot; both have huge slack vs. HBM DMA (the binding resource).
    x = x_ref[...].astype(jnp.float32)
    o_ref[...] = jnp.log1p(x * inv_margin_ref[0]).astype(o_ref.dtype)


def _round_up(a, b):
    return ((a + b - 1) // b) * b


def _select_tiling():
    """Return (block_bytes, vmem_limit_bytes), generation-aware.

    v5e/v6e: 128 MiB physical VMEM -> 16 MiB blocks (2 in + 2 out double-buffered
    = 64 MiB) under a 96 MiB scoped limit.  v7x: 64 MiB per TensorCore -> 8 MiB
    blocks (4 x 8 = 32 MiB) under a 44 MiB limit.  Unknown chips fall back to
    the conservative v7x numbers (safe everywhere).
    """
    try:
        vmem_cap = pltpu.get_tpu_info().vmem_capacity_bytes
    except Exception:
        vmem_cap = None
    if vmem_cap is not None and vmem_cap >= 100 * 1024 * 1024:
        return 16 * 1024 * 1024, 96 * 1024 * 1024
    return 8 * 1024 * 1024, 44 * 1024 * 1024


def _run_blocks(x2d, out_dtype, inv_margin, donate):
    rows, lanes = x2d.shape
    assert lanes == LANES
    in_itemsize = jnp.dtype(x2d.dtype).itemsize
    buf_itemsize = max(in_itemsize, jnp.dtype(out_dtype).itemsize)
    sublane_align = max(8, 32 // in_itemsize)  # 8 (f32), 16 (bf16), 32 (8-bit)

    block_bytes, vmem_limit = _select_tiling()
    block_rows = max(sublane_align, block_bytes // (LANES * buf_itemsize))
    # Keep >= 4 grid steps when rows allow: >= 2 steps per v7x TensorCore so each
    # core overlaps its input DMA / compute / output DMA (harmless on v5e/v6e,
    # no effect on large inputs where the natural step count is already large).
    if rows >= 4 * sublane_align:
        block_rows = min(block_rows, _round_up(rows // 4, sublane_align))
    block_rows = min(block_rows, rows)

    grid = (pl.cdiv(rows, block_rows),)  # ragged last block is fine (elementwise)
    inv_m = jnp.full((1,), inv_margin, dtype=jnp.float32)

    extra = {}
    if donate and jnp.dtype(x2d.dtype) == jnp.dtype(out_dtype):
        # Alias x2d (input index 1) onto the output: halves the HBM footprint for
        # very large tensors when the caller donates x at the jit boundary.
        extra["input_output_aliases"] = {1: 0}

    return pl.pallas_call(
        _log1p_scale_kernel,
        out_shape=jax.ShapeDtypeStruct((rows, LANES), out_dtype),
        grid_spec=pltpu.PrefetchScalarGridSpec(
            num_scalar_prefetch=0,
            grid=grid,
            in_specs=[
                pl.BlockSpec(memory_space=pltpu.MemorySpace.SMEM),  # inv_margin
                pl.BlockSpec((block_rows, LANES), lambda i: (i, 0)),
            ],
            out_specs=pl.BlockSpec((block_rows, LANES), lambda i: (i, 0)),
        ),
        compiler_params=pltpu.CompilerParams(
            dimension_semantics=("parallel",),
            vmem_limit_bytes=vmem_limit,
        ),
        **extra,
    )(inv_m, x2d)


def relu_log_app_plus_positive_loss(x, margin: float = 1.0, donate: bool = False):
    """log(1 + x / margin), elementwise, via a Pallas TPU kernel.

    Floating f32/bf16 inputs keep their dtype end-to-end (streamed natively,
    computed in f32 per tile).  Integer inputs are streamed natively and
    promoted to float32 inside the kernel (matching PyTorch's true-division
    promotion) with no extra wrapper cast pass over HBM.
    """
    orig_shape = x.shape
    inv_margin = 1.0 / float(margin)

    dt = jnp.dtype(x.dtype)
    if dt in (jnp.dtype(jnp.float32), jnp.dtype(jnp.bfloat16)):
        out_dtype = dt                      # stream natively, keep dtype
    elif jnp.issubdtype(dt, jnp.integer) and dt.itemsize <= 4:
        out_dtype = jnp.dtype(jnp.float32)  # stream ints natively; kernel upcasts
    else:
        # bool / 64-bit / f16 etc. -- rare; promote in the wrapper.
        x = x.astype(jnp.float32)
        out_dtype = jnp.dtype(jnp.float32)

    xf = x.reshape(-1)
    n = xf.shape[0]
    if n == 0:
        return jnp.zeros(orig_shape, out_dtype)

    n_main = (n // LANES) * LANES
    if n_main == 0:
        # Tiny (< 512 elements): plain jnp, a kernel launch is not worth it.
        y = jnp.log1p(xf.astype(jnp.float32) * inv_margin).astype(out_dtype)
        return y.reshape(orig_shape)

    if n_main == n:
        # Lane-aligned (common case): zero extra HBM passes (flatten is free).
        out = _run_blocks(xf.reshape(-1, LANES), out_dtype, inv_margin, donate)
        return out.reshape(orig_shape)

    # Lane-unaligned: kernel over the aligned prefix, tiny jnp op on the tail.
    # TODO(synk): the concatenate below still re-materializes the output once; a
    # fully fused tail would need a manual-DMA 1D kernel (pl.ANY + masked final
    # chunk), which is not worth the layout risk for a pure elementwise op.
    main = _run_blocks(xf[:n_main].reshape(-1, LANES), out_dtype, inv_margin, False)
    tail = jnp.log1p(xf[n_main:].astype(jnp.float32) * inv_margin).astype(out_dtype)
    out = jnp.concatenate([main.reshape(-1), tail])
    return out.reshape(orig_shape)


if __name__ == "__main__":
    key = jax.random.PRNGKey(0)
    k0, k1, k2, k3 = jax.random.split(key, 4)

    # 1) f32 NCHW input (lane-aligned -> pure kernel path, no extra HBM passes).
    x = jax.random.uniform(k0, (2, 4, 16, 16), dtype=jnp.float32)
    y = jax.block_until_ready(relu_log_app_plus_positive_loss(x, margin=1.0))
    ref = jnp.log(1.0 + x / 1.0)
    assert y.shape == x.shape and y.dtype == x.dtype
    assert jnp.allclose(y, ref, atol=1e-6, rtol=1e-6)

    # 2) bf16 input streamed natively (f32 compute per tile, bf16 store).
    xb = jax.random.uniform(k1, (2, 4, 16, 16), dtype=jnp.float32).astype(jnp.bfloat16)
    yb = jax.block_until_ready(relu_log_app_plus_positive_loss(xb, margin=1.0))
    refb = jnp.log1p(xb.astype(jnp.float32))
    assert yb.shape == xb.shape and yb.dtype == xb.dtype
    assert jnp.allclose(yb.astype(jnp.float32), refb, atol=1e-2, rtol=1e-2)

    # 3) int32 input streamed natively; in-kernel upcast; float32 output.
    xi = jax.random.randint(k2, (2, 4, 16, 16), 0, 7, dtype=jnp.int32)
    yi = jax.block_until_ready(relu_log_app_plus_positive_loss(xi, margin=2.0))
    refi = jnp.log1p(xi.astype(jnp.float32) / 2.0)
    assert yi.shape == xi.shape and yi.dtype == jnp.float32
    assert jnp.allclose(yi, refi, atol=1e-6, rtol=1e-6)

    # 4a) Tiny odd shape (< 512 elements): pure jnp fallback path.
    xo = jax.random.uniform(k3, (3, 5, 7), dtype=jnp.float32)
    yo = jax.block_until_ready(relu_log_app_plus_positive_loss(xo, margin=0.5))
    assert yo.shape == xo.shape and yo.dtype == xo.dtype
    assert jnp.allclose(yo, jnp.log(1.0 + xo / 0.5), atol=1e-5, rtol=1e-5)

    # 4b) Lane-unaligned but > 512 elements: aligned-prefix kernel + jnp tail.
    xu = jax.random.uniform(k3, (3, 5, 7, 5), dtype=jnp.float32)
    yu = jax.block_until_ready(relu_log_app_plus_positive_loss(xu, margin=0.5))
    assert yu.shape == xu.shape and yu.dtype == xu.dtype
    assert jnp.allclose(yu, jnp.log(1.0 + xu / 0.5), atol=1e-5, rtol=1e-5)

    print("KERNEL_OK")
</pallas_src>

<mosaic_0001>
module attributes {stable_mosaic.version = 11 : i64} {
  func.func @_log1p_scale_kernel(%arg0: i32, %arg1: memref<1xf32, #tpu.memory_space<smem>>, %arg2: memref<4x512xf32, #tpu.memory_space<vmem>>, %arg3: memref<4x512xf32, #tpu.memory_space<vmem>>) attributes {dimension_semantics = [#tpu.dimension_semantics<parallel>], iteration_bounds = array<i64: 1>, scalar_prefetch = 0 : i64, scratch_operands = 0 : i64, tpu.core_type = #tpu.core_type<tc>, window_params = [{transform_indices = @transform_0, window_bounds = array<i64: 1>}, {transform_indices = @transform_1, window_bounds = array<i64: 4, 512>}, {transform_indices = @transform_2, window_bounds = array<i64: 4, 512>}]} {
    %c0 = arith.constant 0 : index
    %c0_0 = arith.constant 0 : index
    %0 = vector.load %arg2[%c0, %c0_0] : memref<4x512xf32, #tpu.memory_space<vmem>>, vector<4x512xf32>
    %c0_1 = arith.constant 0 : index
    %1 = memref.load %arg1[%c0_1] : memref<1xf32, #tpu.memory_space<smem>>
    %2 = vector.broadcast %1 : f32 to vector<4x512xf32>
    %3 = arith.mulf %0, %2 : vector<4x512xf32>
    %4 = math.log1p %3 : vector<4x512xf32>
    %c0_2 = arith.constant 0 : index
    %c0_3 = arith.constant 0 : index
    %5 = vector.load %arg3[%c0_2, %c0_3] : memref<4x512xf32, #tpu.memory_space<vmem>>, vector<4x512xf32>
    tpu.vector_store %arg3[%c0_2, %c0_3], %4 {strides = array<i32>} : memref<4x512xf32, #tpu.memory_space<vmem>>, vector<4x512xf32>,
    return
  }
  func.func @transform_0(%arg0: i32) -> i32 {
    %c0_i32 = arith.constant 0 : i32
    %c0_i32_0 = arith.constant 0 : i32
    return %c0_i32 : i32
  }
  func.func @transform_1(%arg0: i32) -> (i32, i32) {
    %c0_i32 = arith.constant 0 : i32
    %c0_i32_0 = arith.constant 0 : i32
    return %arg0, %c0_i32 : i32, i32
  }
  func.func @transform_2(%arg0: i32) -> (i32, i32) {
    %c0_i32 = arith.constant 0 : i32
    %c0_i32_0 = arith.constant 0 : i32
    return %arg0, %c0_i32 : i32, i32
  }
}

</mosaic_0001>

<llo_original>
// kernel: tpu_custom_call.1
$region0: #{tpu_custom_call.1}
  #allocation0 [shape = 'u32[]', space=smem, size = 0x4, offset = 0x4, fixed_abs, tag = 'smem constant byte address 0x4 - core index']
  #allocation1 [shape = 'u32[144,128]{1,0:T(1,128)}', space=vmem, size = 0x12000, scoped, tag = 'internal scratch']
  #allocation2 [shape = 'f32[1]{0:T(128)S(6)}', space=smem, size = 0x200, scoped, tag = 'scoped memory for tpu_custom_call.1']
  %s0 = inlined_call_operand.<no memory space> [shape: f32[1], index: 0, kind: input, shape index: {}]
  %s1 = inlined_call_operand.hbm [shape: f32[4,512], index: 1, kind: input, shape index: {}]
  %s2 = inlined_call_operand.hbm [shape: f32[4,512], index: 2, kind: output, shape index: {}]
  %s3 = sld [smem:[#allocation0]]
  $region22: #{tpu_custom_call.1} parent=0
    _
  %s5 = ssub.s32 1, %s3
  %s6 = scalar_select 0, %s5, %s3
  %7 = sst [smem:[#allocation2]] %s0
  $region1: #{tpu_custom_call.1} parent=0
    #allocation3 [shape = 'u8[8192]{0}', space=vmem, size = 0x2000, scoped, tag = 'input window, operand 1, single buffered']
    #allocation4 [shape = 's32[1]{0}', space=sflag, size = 0x4, scoped, tag = 'scoped memory for tpu_custom_call.1']
    #allocation5 [shape = 's32[1]{0}', space=sflag, size = 0x4, scoped, tag = 'scoped memory for tpu_custom_call.1']
    #allocation6 [shape = 'u8[8192]{0}', space=vmem, size = 0x2000, scoped, tag = 'output window, operand 0, single buffered']
    %8 = vsyncpa [#allocation4], 0
    %9 = vsyncpa [#allocation5], 0
    // Predicated region
    $region2: #{tpu_custom_call.1} parent=1 // pred_check
      _
    $region3: #{tpu_custom_call.1} parent=1 // pred_check_branch
      %11 = sbr.rel (0) target = $region5
    $region4: #{tpu_custom_call.1} parent=1 // pred_region
      _
    $region5: #{tpu_custom_call.1} parent=1 // pred_fallthru
      _
    // Predicated region
    $region6: #{tpu_custom_call.1} parent=1 // pred_check
      _
    $region7: #{tpu_custom_call.1} parent=1 // pred_check_branch
      %13 = sbr.rel (0) target = $region9
    $region8: #{tpu_custom_call.1} parent=1 // pred_region
      %s15 = ssub.s32 256, 256
      %16 = vsyncadd [#allocation4], %s15
      %s18 = sshll.u32 [#allocation3], 4
      %s19 = int_to_ptr.vmem [resolvable:$true] %s18
      %21 = dma.hbm_to_vmem [thread:$0]  %s1, 256, %s19, [#allocation4]
    $region9: #{tpu_custom_call.1} parent=1 // pred_fallthru
      _
    // Predicated region
    $region10: #{tpu_custom_call.1} parent=1 // pred_check
      _
    $region11: #{tpu_custom_call.1} parent=1 // pred_check_branch
      %23 = sbr.rel (0) target = $region13
    $region12: #{tpu_custom_call.1} parent=1 // pred_region
      %24 = dma.done [#allocation4], 256
    $region13: #{tpu_custom_call.1} parent=1 // pred_fallthru
      _
    %v25 = vld [vmem:[#allocation3] sm:$0xff]
    %v26 = vld [vmem:[#allocation3 + $0x8] sm:$0xff]
    %s27 = sld [smem:[#allocation2]]
    %v28 = vstv %s27
    %v29 = vmul.f32 %v25, %v28
    %v30 = vmul.f32 %v26, %v28
    %v31 = vadd.f32 %v29, 1.0
    %v32 = vlog2.pop %v31
    %v33 = vmul.f32 %v32, 0.6931472
    %v34 = vmul.f32 -0.5, %v29
    %v35 = vadd.f32 %v34, 1.0
    %v36 = vmul.f32 %v35, %v29
    %v37 = vand.u32 2147483647, %v29
    %vm38 = vcmp.lt.f32.partialorder %v37, 0.0004427343
    %v39 = vsel %vm38, %v36, %v33
    %v40 = vadd.f32 %v30, 1.0
    %v41 = vlog2.pop %v40
    %v42 = vmul.f32 %v41, 0.6931472
    %v43 = vmul.f32 -0.5, %v30
    %v44 = vadd.f32 %v43, 1.0
    %v45 = vmul.f32 %v44, %v30
    %v46 = vand.u32 2147483647, %v30
    %vm47 = vcmp.lt.f32.partialorder %v46, 0.0004427343
    %v48 = vsel %vm47, %v45, %v42
    %49 = vst [vmem:[#allocation6] sm:$0xff] %v39
    %50 = vst [vmem:[#allocation6 + $0x8] sm:$0xff] %v48
    // Predicated region
    $region14: #{tpu_custom_call.1} parent=1 // pred_check
      _
    $region15: #{tpu_custom_call.1} parent=1 // pred_check_branch
      %52 = sbr.rel (0) target = $region17
    $region16: #{tpu_custom_call.1} parent=1 // pred_region
      %s54 = ssub.s32 256, 256
      %55 = vsyncadd [#allocation5], %s54
      %s57 = sshll.u32 [#allocation6], 4
      %s58 = int_to_ptr.vmem [resolvable:$true] %s57
      %60 = dma.vmem_to_hbm [thread:$0]  %s58, 256, %s2, [#allocation5]
    $region17: #{tpu_custom_call.1} parent=1 // pred_fallthru
      _
    // Predicated region
    $region18: #{tpu_custom_call.1} parent=1 // pred_check
      _
    $region19: #{tpu_custom_call.1} parent=1 // pred_check_branch
      %62 = sbr.rel (0) target = $region21
    $region20: #{tpu_custom_call.1} parent=1 // pred_region
      %63 = dma.done [#allocation5], 256
    $region21: #{tpu_custom_call.1} parent=1 // pred_fallthru
      _
    %64 = vsyncpa [#allocation4], 1
    %65 = vsyncpa [#allocation5], 1

</llo_original>
